<compile_context>
chip_gen: v7x
topology: tpu7x:2x2x1
jax: 0.10.0
libtpu: 0.0.40
codegen_flags: <defaults>
</compile_context>

<pallas_src>
import numpy as np
import jax
import jax.numpy as jnp
from jax.experimental import pallas as pl
from jax.experimental.pallas import tpu as pltpu


# ----------------------------------------------------------------------------
# Kernel: one grid step = one block of B center beads -> partial (sum, count)
# ----------------------------------------------------------------------------
def _recon_kernel(fpack_ref, lpack_ref, idcs_ref, out_sum_ref, out_cnt_ref):
    # fpack_ref: [B, 9, K] f32  rows 0-2 rel xyz, 3 bond len, 4 ones, 5 weight,
    #                           6-8 bead position (broadcast along K)
    # lpack_ref: [B, 2L, K] i32 rows 0..L-1 level masks, L..2L-1 anchor atom id
    # idcs_ref : [B, K, 1] i32  target atom index per slot (-1 = unused slot)
    # out_sum_ref: [1, 3, A] f32 partial position sum for this block of beads
    # out_cnt_ref: [1, 1, A] f32 partial reconstruction count
    B = fpack_ref.shape[0]
    K = fpack_ref.shape[2]
    L = lpack_ref.shape[1] // 2
    A = out_sum_ref.shape[2]

    # loop-invariant constants, hoisted out of the bead loop
    iota_ka = jax.lax.broadcasted_iota(jnp.int32, (K, A), 1)

    def bead_body(b, carry):
        sum_acc, cnt_acc = carry
        f = fpack_ref[b]                      # [9, K]
        lp = lpack_ref[b]                     # [2L, K]
        ic = idcs_ref[b]                      # [K, 1]

        rel = f[0:3, :]                       # [3, K]
        blen = f[3:4, :]                      # [1, K]
        wrows = f[4:6, :]                     # [2, K]  (ones, weights)
        bpos = f[6:9, 0:1]                    # [3, 1]

        # normalize_b2a_rel_vec (keep exact torch `1/(norm+1e-5)` semantics)
        norm = jnp.sqrt(jnp.sum(rel * rel, axis=0, keepdims=True))   # [1, K]
        rel = rel * (blen / (norm + 1e-5))                           # [3, K]

        # Hierarchical placement in slot space: every owned atom starts at the
        # bead position (level 0 / root), level l>0 slots are re-placed at
        # anchor position + scaled relative vector.
        spos = jnp.broadcast_to(bpos, (3, K))                        # [3, K]
        for level in range(1, L):
            lvl_row = lp[level:level + 1, :]                         # [1, K]
            anch_row = lp[L + level:L + level + 1, :]                # [1, K]
            # M[k', k] = 1 iff slot k' owns the anchor atom of slot k
            m = (ic == anch_row).astype(jnp.float32)                 # [K, K]
            anchor_pos = jnp.dot(spos, m,
                                 preferred_element_type=jnp.float32)  # [3, K]
            spos = jnp.where(lvl_row > 0, anchor_pos + rel, spos)

        # Scatter slots -> lane-dense atom table with two small matmuls.
        oh = (iota_ka == ic).astype(jnp.float32)                     # [K, A]
        cw = jnp.dot(wrows, oh, preferred_element_type=jnp.float32)  # [2, A]
        ppre = jnp.dot(spos, oh, preferred_element_type=jnp.float32)  # [3, A]
        written = jnp.minimum(cw[0:1, :], 1.0)                       # [1, A]
        watom = cw[1:2, :]                                           # [1, A]

        # weighted-centroid shift correction
        cm = jnp.sum(ppre * watom, axis=1, keepdims=True)            # [3, 1]
        shift = cm - bpos
        pos = ppre - shift * written                                 # [3, A]

        return sum_acc + pos, cnt_acc + written

    sum0 = jnp.zeros((3, A), jnp.float32)
    cnt0 = jnp.zeros((1, A), jnp.float32)
    sum_acc, cnt_acc = jax.lax.fori_loop(0, B, bead_body, (sum0, cnt0))
    out_sum_ref[0] = sum_acc
    out_cnt_ref[0] = cnt_acc


# ----------------------------------------------------------------------------
# Wrapper: packing / padding glue + pallas_call + nanmean combine
# ----------------------------------------------------------------------------
def hierarchical_reconstruction(node_output, bead_pos, node_type,
                                atom_type2bond_lengths, b2a_idcs, b2a_weights,
                                lvl_idcs_mask, lvl_idcs_anchor_mask,
                                center_atoms, n_atoms, beads_per_step=64):
    # TODO(synk): the wrapped `func` GNN and the NOISE_KEY add/subtract around
    # it are outside this kernel; `node_output` is its result.  Single-frame
    # batch is assumed (idcs_mask_slices == [0, N]).
    N = bead_pos.shape[0]
    K = b2a_idcs.shape[1]
    L = lvl_idcs_mask.shape[1]
    C = int(center_atoms.shape[0])

    A_pad = max(128, ((int(n_atoms) + 127) // 128) * 128)   # lane-dense atoms
    B = max(1, min(int(beads_per_step), C))
    G = (C + B - 1) // B
    C_pad = G * B

    # reshape_irreps for "Kx1o": [N, 3K] -> [N, K, 3]; per-type bond lengths
    rel = node_output.reshape(N, K, 3).astype(jnp.float32)
    blen = atom_type2bond_lengths[node_type.reshape(-1)].astype(jnp.float32)

    rel_c = jnp.transpose(rel[center_atoms], (0, 2, 1))            # [C, 3, K]
    blen_c = jnp.transpose(blen[center_atoms], (0, 2, 1))          # [C, 1, K]
    ones_c = jnp.ones((C, 1, K), jnp.float32)
    w_c = b2a_weights[center_atoms].astype(jnp.float32)[:, None, :]  # [C,1,K]
    bpos_c = jnp.broadcast_to(
        bead_pos[center_atoms].astype(jnp.float32)[:, :, None], (C, 3, K))
    fpack = jnp.concatenate([rel_c, blen_c, ones_c, w_c, bpos_c], axis=1)

    lvl_c = lvl_idcs_mask[center_atoms].astype(jnp.int32)          # [C, L, K]
    anch_c = lvl_idcs_anchor_mask[center_atoms].astype(jnp.int32)  # [C, L, K]
    lpack = jnp.concatenate([lvl_c, anch_c], axis=1)               # [C, 2L, K]

    icol = b2a_idcs[center_atoms].astype(jnp.int32)[:, :, None]    # [C, K, 1]

    if C_pad > C:   # inert dummy beads (idcs = -1 => zero contribution)
        pad = C_pad - C
        fpack = jnp.concatenate(
            [fpack, jnp.zeros((pad, 9, K), jnp.float32)], axis=0)
        lpack = jnp.concatenate(
            [lpack, jnp.zeros((pad, 2 * L, K), jnp.int32)], axis=0)
        icol = jnp.concatenate(
            [icol, jnp.full((pad, K, 1), -1, jnp.int32)], axis=0)

    sum_part, cnt_part = pl.pallas_call(
        _recon_kernel,
        out_shape=(jax.ShapeDtypeStruct((G, 3, A_pad), jnp.float32),
                   jax.ShapeDtypeStruct((G, 1, A_pad), jnp.float32)),
        grid_spec=pltpu.PrefetchScalarGridSpec(
            num_scalar_prefetch=0,
            grid=(G,),
            in_specs=[
                pl.BlockSpec((B, 9, K), lambda g: (g, 0, 0)),
                pl.BlockSpec((B, 2 * L, K), lambda g: (g, 0, 0)),
                pl.BlockSpec((B, K, 1), lambda g: (g, 0, 0)),
            ],
            out_specs=[
                pl.BlockSpec((1, 3, A_pad), lambda g: (g, 0, 0)),
                pl.BlockSpec((1, 1, A_pad), lambda g: (g, 0, 0)),
            ],
        ),
        compiler_params=pltpu.CompilerParams(
            dimension_semantics=("parallel",)),
    )(fpack, lpack, icol)

    # nanmean combine over the per-block partials (plain JAX)
    s = jnp.sum(sum_part, axis=0)            # [3, A_pad]
    c = jnp.sum(cnt_part, axis=0)            # [1, A_pad]
    mean = s / jnp.where(c > 0, c, 1.0)
    out = jnp.where(c > 0, mean, jnp.nan)    # [3, A_pad]
    return out.T[:n_atoms]                   # [n_atoms, 3]


# ----------------------------------------------------------------------------
# Pure numpy reference mirroring the PyTorch forward (single batch slice)
# ----------------------------------------------------------------------------
def _reference(node_output, bead_pos, node_type, bond_table, idcs, weights,
               lvl_mask, anchor, edge_src, n_atoms, K):
    rel = np.asarray(node_output, np.float32).reshape(-1, K, 3)
    rel = rel / (np.linalg.norm(rel, axis=-1, keepdims=True) + 1e-5)
    rel = rel * np.asarray(bond_table)[np.asarray(node_type)]
    center = np.unique(np.asarray(edge_src))
    bp = np.asarray(bead_pos, np.float32)
    b2a = np.asarray(idcs)[center]
    w = np.asarray(weights, np.float32)[center]
    lm = np.asarray(lvl_mask, np.float32)[center]
    am = np.asarray(anchor)[center]
    relc = rel[center]
    C = len(center)
    recon = np.full((C, n_atoms, 3), np.nan, dtype=np.float32)
    rows, cols = np.where(b2a >= 0)
    recon[rows, b2a[rows, cols]] = bp[center][rows]
    for level in range(1, lm.shape[1]):
        mr, mc = np.where(lm[:, level] > 0)
        if len(mr) > 0:
            upd = recon[mr, am[:, level][mr, mc]] + relc[mr, mc]
            recon[mr, b2a[mr, mc]] = upd
    cm = np.zeros((C, 3), np.float32)
    np.add.at(cm, rows, recon[rows, b2a[rows, cols]] * w[rows, cols][:, None])
    shifts = cm - bp[center]
    recon[rows, b2a[rows, cols]] -= shifts[rows]
    return np.nanmean(recon, axis=0)


# ----------------------------------------------------------------------------
if __name__ == "__main__":
    # Small synthetic problem: 8 beads, 4 hierarchy slots, 3 levels, 16 atoms.
    N, K, L, NTYPES = 8, 4, 3, 4
    N_ATOMS = 2 * N

    key = jax.random.PRNGKey(0)
    k1, k2, k3 = jax.random.split(key, 3)
    node_output = jax.random.normal(k1, (N, K * 3), jnp.float32)    # in_field
    bead_pos = 3.0 * jax.random.normal(k2, (N, 3), jnp.float32)
    node_type = jax.random.randint(k3, (N,), 0, NTYPES + 1)

    # Parameter atom_type2bond_lengths: torch init is ones; use a deterministic
    # non-trivial variation so the scaling path is exercised.
    bond_table = (1.0 + 0.1 * jnp.arange((NTYPES + 1) * K, dtype=jnp.float32)
                  / ((NTYPES + 1) * K)).reshape(NTYPES + 1, K, 1)

    # Deterministic hierarchy metadata:
    #   every bead owns atoms (2b, 2b+1); even beads additionally own atom
    #   2b+3 at level 2 (so those atoms are reconstructed by two beads and the
    #   nanmean averaging is exercised).
    idcs_np = -np.ones((N, K), np.int32)
    idcs_np[:, 0] = 2 * np.arange(N)
    idcs_np[:, 1] = 2 * np.arange(N) + 1
    weights_np = np.zeros((N, K), np.float32)
    weights_np[:, 0], weights_np[:, 1] = 0.6, 0.4
    lvl_np = np.zeros((N, L, K), np.float32)
    lvl_np[:, 0, 0] = 1.0            # level 0 (root, skipped like torch)
    lvl_np[:, 1, 1] = 1.0            # level 1: slot 1 anchored to atom 2b
    anchor_np = np.zeros((N, L, K), np.int32)
    anchor_np[:, 1, 1] = 2 * np.arange(N)
    even = np.arange(0, N, 2)
    idcs_np[even, 2] = 2 * even + 3
    weights_np[even, 0], weights_np[even, 1], weights_np[even, 2] = 0.5, 0.3, 0.2
    lvl_np[even, 2, 2] = 1.0         # level 2: slot 2 anchored to atom 2b+1
    anchor_np[even, 2, 2] = 2 * even + 1

    edge_src_np = np.concatenate([np.arange(N), np.arange(N)]).astype(np.int32)
    center_atoms = np.unique(edge_src_np)    # == torch.unique(edge_index[0])

    out = hierarchical_reconstruction(
        node_output, bead_pos, node_type, bond_table,
        jnp.asarray(idcs_np), jnp.asarray(weights_np),
        jnp.asarray(lvl_np), jnp.asarray(anchor_np),
        jnp.asarray(center_atoms), N_ATOMS)
    out = jax.block_until_ready(out)

    ref = _reference(np.asarray(node_output), np.asarray(bead_pos),
                     np.asarray(node_type), np.asarray(bond_table),
                     idcs_np, weights_np, lvl_np, anchor_np,
                     edge_src_np, N_ATOMS, K)

    assert out.shape == (N_ATOMS, 3)
    assert np.allclose(np.asarray(out), ref, rtol=1e-4, atol=1e-4,
                       equal_nan=True), "mismatch vs torch-style reference"
    print("KERNEL_OK")
</pallas_src>

<mosaic_0001>
module attributes {stable_mosaic.version = 11 : i64} {
  func.func @_recon_kernel(%arg0: i32, %arg1: memref<8x9x4xf32, #tpu.memory_space<vmem>>, %arg2: memref<8x6x4xi32, #tpu.memory_space<vmem>>, %arg3: memref<8x4x1xi32, #tpu.memory_space<vmem>>, %arg4: memref<1x3x128xf32, #tpu.memory_space<vmem>>, %arg5: memref<1x1x128xf32, #tpu.memory_space<vmem>>) attributes {dimension_semantics = [#tpu.dimension_semantics<parallel>], iteration_bounds = array<i64: 1>, scalar_prefetch = 0 : i64, scratch_operands = 0 : i64, tpu.core_type = #tpu.core_type<tc>, window_params = [{transform_indices = @transform_0, window_bounds = array<i64: 8, 9, 4>}, {transform_indices = @transform_1, window_bounds = array<i64: 8, 6, 4>}, {transform_indices = @transform_2, window_bounds = array<i64: 8, 4, 1>}, {transform_indices = @transform_3, window_bounds = array<i64: 1, 3, 128>}, {transform_indices = @transform_4, window_bounds = array<i64: 1, 1, 128>}]} {
    %0 = tpu.iota {dimensions = array<i32: 1>} : vector<4x128xi32>
    %cst = arith.constant 0.000000e+00 : f32
    %1 = vector.broadcast %cst : f32 to vector<3x128xf32>
    %cst_0 = arith.constant 0.000000e+00 : f32
    %2 = vector.broadcast %cst_0 : f32 to vector<1x128xf32>
    %c0_i32 = arith.constant 0 : i32
    %c8_i32 = arith.constant 8 : i32
    %3 = arith.addi %c0_i32, %c8_i32 : i32
    %c1_i32 = arith.constant 1 : i32
    %4:2 = scf.for %arg6 = %c0_i32 to %3 step %c1_i32 iter_args(%arg7 = %1, %arg8 = %2) -> (vector<3x128xf32>, vector<1x128xf32>)  : i32 {
      %11 = arith.index_cast %arg6 : i32 to index
      %c0_7 = arith.constant 0 : index
      %c0_8 = arith.constant 0 : index
      %12 = vector.load %arg1[%11, %c0_7, %c0_8] : memref<8x9x4xf32, #tpu.memory_space<vmem>>, vector<1x9x4xf32>
      %13 = vector.shape_cast %12 : vector<1x9x4xf32> to vector<9x4xf32>
      %14 = arith.index_cast %arg6 : i32 to index
      %c0_9 = arith.constant 0 : index
      %c0_10 = arith.constant 0 : index
      %15 = vector.load %arg2[%14, %c0_9, %c0_10] : memref<8x6x4xi32, #tpu.memory_space<vmem>>, vector<1x6x4xi32>
      %16 = vector.shape_cast %15 : vector<1x6x4xi32> to vector<6x4xi32>
      %17 = arith.index_cast %arg6 : i32 to index
      %c0_11 = arith.constant 0 : index
      %c0_12 = arith.constant 0 : index
      %18 = vector.load %arg3[%17, %c0_11, %c0_12] : memref<8x4x1xi32, #tpu.memory_space<vmem>>, vector<1x4x1xi32>
      %19 = vector.shape_cast %18 : vector<1x4x1xi32> to vector<4x1xi32>
      %20 = vector.extract_strided_slice %13 {offsets = [0, 0], sizes = [3, 4], strides = [1, 1]} : vector<9x4xf32> to vector<3x4xf32>
      %21 = vector.extract_strided_slice %13 {offsets = [3, 0], sizes = [1, 4], strides = [1, 1]} : vector<9x4xf32> to vector<1x4xf32>
      %22 = vector.extract_strided_slice %13 {offsets = [4, 0], sizes = [2, 4], strides = [1, 1]} : vector<9x4xf32> to vector<2x4xf32>
      %23 = vector.extract_strided_slice %13 {offsets = [6, 0], sizes = [3, 1], strides = [1, 1]} : vector<9x4xf32> to vector<3x1xf32>
      %24 = arith.mulf %20, %20 : vector<3x4xf32>
      %cst_13 = arith.constant dense<0.000000e+00> : vector<4xf32>
      %25 = vector.multi_reduction <add>, %24, %cst_13 [0] : vector<3x4xf32> to vector<4xf32>
      %26 = vector.shape_cast %25 : vector<4xf32> to vector<1x4xf32>
      %27 = math.sqrt %26 : vector<1x4xf32>
      %cst_14 = arith.constant 9.99999974E-6 : f32
      %28 = vector.broadcast %cst_14 : f32 to vector<1x4xf32>
      %29 = arith.addf %27, %28 : vector<1x4xf32>
      %30 = arith.divf %21, %29 : vector<1x4xf32>
      %31 = vector.broadcast %30 : vector<1x4xf32> to vector<3x4xf32>
      %32 = arith.mulf %20, %31 : vector<3x4xf32>
      %33 = vector.shape_cast %23 : vector<3x1xf32> to vector<3x1xf32>
      %34 = vector.broadcast %33 : vector<3x1xf32> to vector<3x4xf32>
      %35 = vector.extract_strided_slice %16 {offsets = [1, 0], sizes = [1, 4], strides = [1, 1]} : vector<6x4xi32> to vector<1x4xi32>
      %36 = vector.extract_strided_slice %16 {offsets = [4, 0], sizes = [1, 4], strides = [1, 1]} : vector<6x4xi32> to vector<1x4xi32>
      %37 = vector.broadcast %19 : vector<4x1xi32> to vector<4x4xi32>
      %38 = vector.broadcast %36 : vector<1x4xi32> to vector<4x4xi32>
      %39 = arith.cmpi eq, %37, %38 : vector<4x4xi32>
      %40 = arith.extui %39 : vector<4x4xi1> to vector<4x4xi32>
      %41 = arith.sitofp %40 : vector<4x4xi32> to vector<4x4xf32>
      %cst_15 = arith.constant dense<0.000000e+00> : vector<3x4xf32>
      %42 = tpu.matmul %34, %41, %cst_15 {dimension_numbers = #tpu.dot_dimension_numbers<[1], [0], [0], [1], [0, 0, 1, 1], [], []>} : vector<3x4xf32>, vector<4x4xf32>, vector<3x4xf32> -> vector<3x4xf32>
      %c0_i32_16 = arith.constant 0 : i32
      %43 = vector.broadcast %c0_i32_16 : i32 to vector<1x4xi32>
      %44 = arith.cmpi sgt, %35, %43 : vector<1x4xi32>
      %45 = arith.addf %42, %32 : vector<3x4xf32>
      %46 = vector.shape_cast %44 : vector<1x4xi1> to vector<1x4xi1>
      %47 = vector.broadcast %46 : vector<1x4xi1> to vector<3x4xi1>
      %48 = arith.select %47, %45, %34 : vector<3x4xi1>, vector<3x4xf32>
      %49 = vector.extract_strided_slice %16 {offsets = [2, 0], sizes = [1, 4], strides = [1, 1]} : vector<6x4xi32> to vector<1x4xi32>
      %50 = vector.extract_strided_slice %16 {offsets = [5, 0], sizes = [1, 4], strides = [1, 1]} : vector<6x4xi32> to vector<1x4xi32>
      %51 = vector.broadcast %19 : vector<4x1xi32> to vector<4x4xi32>
      %52 = vector.broadcast %50 : vector<1x4xi32> to vector<4x4xi32>
      %53 = arith.cmpi eq, %51, %52 : vector<4x4xi32>
      %54 = arith.extui %53 : vector<4x4xi1> to vector<4x4xi32>
      %55 = arith.sitofp %54 : vector<4x4xi32> to vector<4x4xf32>
      %cst_17 = arith.constant dense<0.000000e+00> : vector<3x4xf32>
      %56 = tpu.matmul %48, %55, %cst_17 {dimension_numbers = #tpu.dot_dimension_numbers<[1], [0], [0], [1], [0, 0, 1, 1], [], []>} : vector<3x4xf32>, vector<4x4xf32>, vector<3x4xf32> -> vector<3x4xf32>
      %c0_i32_18 = arith.constant 0 : i32
      %57 = vector.broadcast %c0_i32_18 : i32 to vector<1x4xi32>
      %58 = arith.cmpi sgt, %49, %57 : vector<1x4xi32>
      %59 = arith.addf %56, %32 : vector<3x4xf32>
      %60 = vector.shape_cast %58 : vector<1x4xi1> to vector<1x4xi1>
      %61 = vector.broadcast %60 : vector<1x4xi1> to vector<3x4xi1>
      %62 = arith.select %61, %59, %48 : vector<3x4xi1>, vector<3x4xf32>
      %63 = vector.broadcast %19 : vector<4x1xi32> to vector<4x128xi32>
      %64 = arith.cmpi eq, %0, %63 : vector<4x128xi32>
      %65 = arith.extui %64 : vector<4x128xi1> to vector<4x128xi32>
      %66 = arith.sitofp %65 : vector<4x128xi32> to vector<4x128xf32>
      %cst_19 = arith.constant dense<0.000000e+00> : vector<2x128xf32>
      %67 = tpu.matmul %22, %66, %cst_19 {dimension_numbers = #tpu.dot_dimension_numbers<[1], [0], [0], [1], [0, 0, 1, 1], [], []>} : vector<2x4xf32>, vector<4x128xf32>, vector<2x128xf32> -> vector<2x128xf32>
      %cst_20 = arith.constant dense<0.000000e+00> : vector<3x128xf32>
      %68 = tpu.matmul %62, %66, %cst_20 {dimension_numbers = #tpu.dot_dimension_numbers<[1], [0], [0], [1], [0, 0, 1, 1], [], []>} : vector<3x4xf32>, vector<4x128xf32>, vector<3x128xf32> -> vector<3x128xf32>
      %69 = vector.extract_strided_slice %67 {offsets = [0, 0], sizes = [1, 128], strides = [1, 1]} : vector<2x128xf32> to vector<1x128xf32>
      %cst_21 = arith.constant 1.000000e+00 : f32
      %70 = vector.broadcast %cst_21 : f32 to vector<1x128xf32>
      %71 = arith.minimumf %69, %70 : vector<1x128xf32>
      %72 = vector.extract_strided_slice %67 {offsets = [1, 0], sizes = [1, 128], strides = [1, 1]} : vector<2x128xf32> to vector<1x128xf32>
      %73 = vector.broadcast %72 : vector<1x128xf32> to vector<3x128xf32>
      %74 = arith.mulf %68, %73 : vector<3x128xf32>
      %cst_22 = arith.constant dense<0.000000e+00> : vector<3xf32>
      %75 = vector.multi_reduction <add>, %74, %cst_22 [1] : vector<3x128xf32> to vector<3xf32>
      %76 = vector.shape_cast %75 : vector<3xf32> to vector<3x1xf32>
      %77 = arith.subf %76, %23 : vector<3x1xf32>
      %78 = vector.broadcast %77 : vector<3x1xf32> to vector<3x128xf32>
      %79 = vector.broadcast %71 : vector<1x128xf32> to vector<3x128xf32>
      %80 = arith.mulf %78, %79 : vector<3x128xf32>
      %81 = arith.subf %68, %80 : vector<3x128xf32>
      %82 = arith.addf %arg7, %81 : vector<3x128xf32>
      %83 = arith.addf %arg8, %71 : vector<1x128xf32>
      scf.yield %82, %83 : vector<3x128xf32>, vector<1x128xf32>
    }
    %c8_i32_1 = arith.constant 8 : i32
    %c0 = arith.constant 0 : index
    %c0_2 = arith.constant 0 : index
    %c0_3 = arith.constant 0 : index
    %5 = vector.load %arg4[%c0, %c0_2, %c0_3] : memref<1x3x128xf32, #tpu.memory_space<vmem>>, vector<1x3x128xf32>
    %6 = vector.shape_cast %5 : vector<1x3x128xf32> to vector<3x128xf32>
    %7 = vector.shape_cast %4#0 : vector<3x128xf32> to vector<1x3x128xf32>
    tpu.vector_store %arg4[%c0, %c0_2, %c0_3], %7 {strides = array<i32>} : memref<1x3x128xf32, #tpu.memory_space<vmem>>, vector<1x3x128xf32>,
    %c0_4 = arith.constant 0 : index
    %c0_5 = arith.constant 0 : index
    %c0_6 = arith.constant 0 : index
    %8 = vector.load %arg5[%c0_4, %c0_5, %c0_6] : memref<1x1x128xf32, #tpu.memory_space<vmem>>, vector<1x1x128xf32>
    %9 = vector.shape_cast %8 : vector<1x1x128xf32> to vector<1x128xf32>
    %10 = vector.shape_cast %4#1 : vector<1x128xf32> to vector<1x1x128xf32>
    tpu.vector_store %arg5[%c0_4, %c0_5, %c0_6], %10 {strides = array<i32>} : memref<1x1x128xf32, #tpu.memory_space<vmem>>, vector<1x1x128xf32>,
    return
  }
  func.func @transform_0(%arg0: i32) -> (i32, i32, i32) {
    %c0_i32 = arith.constant 0 : i32
    %c0_i32_0 = arith.constant 0 : i32
    %c0_i32_1 = arith.constant 0 : i32
    return %arg0, %c0_i32, %c0_i32_0 : i32, i32, i32
  }
  func.func @transform_1(%arg0: i32) -> (i32, i32, i32) {
    %c0_i32 = arith.constant 0 : i32
    %c0_i32_0 = arith.constant 0 : i32
    %c0_i32_1 = arith.constant 0 : i32
    return %arg0, %c0_i32, %c0_i32_0 : i32, i32, i32
  }
  func.func @transform_2(%arg0: i32) -> (i32, i32, i32) {
    %c0_i32 = arith.constant 0 : i32
    %c0_i32_0 = arith.constant 0 : i32
    %c0_i32_1 = arith.constant 0 : i32
    return %arg0, %c0_i32, %c0_i32_0 : i32, i32, i32
  }
  func.func @transform_3(%arg0: i32) -> (i32, i32, i32) {
    %c0_i32 = arith.constant 0 : i32
    %c0_i32_0 = arith.constant 0 : i32
    %c0_i32_1 = arith.constant 0 : i32
    return %arg0, %c0_i32, %c0_i32_0 : i32, i32, i32
  }
  func.func @transform_4(%arg0: i32) -> (i32, i32, i32) {
    %c0_i32 = arith.constant 0 : i32
    %c0_i32_0 = arith.constant 0 : i32
    %c0_i32_1 = arith.constant 0 : i32
    return %arg0, %c0_i32, %c0_i32_0 : i32, i32, i32
  }
}

</mosaic_0001>

<llo_original>
// kernel: tpu_custom_call.1
$region0: #{tpu_custom_call.1}
  #allocation0 [shape = 'u32[]', space=smem, size = 0x4, offset = 0x4, fixed_abs, tag = 'smem constant byte address 0x4 - core index']
  #allocation1 [shape = 'u32[144,128]{1,0:T(1,128)}', space=vmem, size = 0x12000, scoped, tag = 'internal scratch']
  %s0 = inlined_call_operand.vmem [shape: f32[8,9,4], index: 0, kind: input, shape index: {}]
  %s1 = inlined_call_operand.vmem [shape: s32[8,6,4], index: 1, kind: input, shape index: {}]
  %s2 = inlined_call_operand.vmem [shape: s32[8,4,1], index: 2, kind: input, shape index: {}]
  %s3 = inlined_call_operand.vmem [shape: f32[1,3,128], index: 3, kind: output, shape index: {0}]
  %s4 = inlined_call_operand.hbm [shape: f32[1,1,128], index: 4, kind: output, shape index: {1}]
  %5 = xla_tuple %s3, %s4
  %s6 = sld [smem:[#allocation0]]
  $region37: #{tpu_custom_call.1} parent=0
    _
  %s8 = ssub.s32 1, %s6
  %s9 = scalar_select 0, %s8, %s6
  $region1: #{tpu_custom_call.1} parent=0
    #allocation2 [shape = 'u8[512]{0}', space=vmem, size = 0x400, scoped, tag = 'output window, operand 1, single buffered']
    #allocation3 [shape = 's32[1]{0}', space=sflag, size = 0x4, scoped, tag = 'scoped memory for tpu_custom_call.1']
    %10 = vsyncpa [#allocation3], 0
    // Predicated region
    $region2: #{tpu_custom_call.1} parent=1 // pred_check
      _
    $region3: #{tpu_custom_call.1} parent=1 // pred_check_branch
      %12 = sbr.rel (0) target = $region5
    $region4: #{tpu_custom_call.1} parent=1 // pred_region
      _
    $region5: #{tpu_custom_call.1} parent=1 // pred_fallthru
      _
    // Predicated region
    $region6: #{tpu_custom_call.1} parent=1 // pred_check
      _
    $region7: #{tpu_custom_call.1} parent=1 // pred_check_branch
      %14 = sbr.rel (0) target = $region9
    $region8: #{tpu_custom_call.1} parent=1 // pred_region
      _
    $region9: #{tpu_custom_call.1} parent=1 // pred_fallthru
      _
    // Predicated region
    $region10: #{tpu_custom_call.1} parent=1 // pred_check
      _
    $region11: #{tpu_custom_call.1} parent=1 // pred_check_branch
      %16 = sbr.rel (0) target = $region13
    $region12: #{tpu_custom_call.1} parent=1 // pred_region
      _
    $region13: #{tpu_custom_call.1} parent=1 // pred_fallthru
      _
    %v17 = vlaneseq
    %v18 = vand.u32 %v17, 127
    loop: start=0, step=1, limit=8
    $region14: #{tpu_custom_call.1} parent=1 // loop_pre_header
      _
    $region15: #{tpu_custom_call.1} parent=1 // loop_header
      %s20 = sphi 0, %s24
      %p21 = scmp.ge.s32.totalorder %s20, 8
      %v25 = vphi 0.0, %v436
      %v26 = vphi 0.0, %v437
    $region16: #{tpu_custom_call.1} parent=1 // loop_header_branch
      %23 = sbr.rel (%p21) target = $region20
    $region17: #{tpu_custom_call.1} parent=1 // loop_body
      %s27 = smul.u32 %s20, 16
      %s28 = scalar_lea.vmem %s0, %s27
      %v29 = vld [vmem:[%s28] sm:$0xff]
      %v30 = vld [vmem:[%s28 + $0x8] sm:$0x1]
      %s31 = smul.u32 %s20, 8
      %s32 = scalar_lea.vmem %s1, %s31
      %v33 = vld [vmem:[%s32] sm:$0x3f]
      %s34 = smul.u32 %s20, 4
      %s35 = scalar_lea.vmem %s2, %s34
      %v36 = vld [vmem:[%s35] sm:$0xf]
      %v37 = vmul.f32 %v29, %v29
      %vm38 = vcmask 26624
      %v39 = vsel %vm38, %v37, 0.0
      %v40 = vrot.slane %v39, 4
      %v41 = vadd.f32 %v39, %v40
      %v42 = vrot.slane %v41, 2
      %v43 = vadd.f32 %v41, %v42
      %v44 = vrot.slane %v43, 1
      %v45 = vadd.f32 %v43, %v44
      %v46 = vrsqrt.pop %v45
      %v47 = vmul.f32 %v45, %v46
      %vm48 = vcmp.eq.f32.partialorder %v45, inf
      %v49 = vsel %vm48, %v45, %v47
      %vm50 = vcmp.eq.f32.partialorder %v45, 0.0
      %v51 = vand.u32 %v45, 2147483648
      %v52 = vsel %vm50, %v51, %v49
      %v53 = vadd.f32 %v52, 1e-05
      %v54 = vrcp.pop %v53
      %v55 = vmul.f32 %v29, %v54
      %v56 = vlaneseq
      %v57 = vshrl.u32 %v56, 7
      %v58 = vsub.s32 3, %v57
      %v59 = vrot.slane %v55, %v58
      %v60 = vmul.f32 %v29, %v59
      %62 = vset.pattern.permute.xlu0 0
      %63 = vperm.xlu0 %62, %v29
      %v64 = vpop.permute.xlu0 %63
      %66 = vset.pattern.permute.xlu0 0
      %67 = vperm.xlu0 %66, %v30
      %v68 = vpop.permute.xlu0 %67
      %69 = vset.pattern.permute.xlu0 0
      %70 = vperm.xlu0 %69, %v36
      %v71 = vpop.permute.xlu0 %70
      %v72 = vlaneseq
      %v73 = vshrl.u32 %v72, 7
      %v74 = vsub.s32 4, %v73
      %v75 = vrot.slane %v33, %v74
      %vm76 = vcmp.eq.s32.totalorder %v71, %v75
      %v77 = vsel %vm76, 1, 0
      %v78 = vcvt.s32.f32 %v77
      %vm79 = vcmp.gt.s32.totalorder %v33, 0
      %vm80 = vcmask 1041408
      %v81 = vrot.slane %v64, 6
      %v82 = vrot.slane %v68, 6
      %v83 = vsel %vm80, %v81, %v82
      %vm84 = vcmask 31744
      %v85 = vsel %vm84, %v83, 0
      %vm87 = vcmask 1043456
      %v89 = vsel %vm87, %v78, 0
      %91 = vmatprep.subr.mxu0 0.0
      %92 = vmatpush1.msra.mxu0 %v89
      %93 = vmatprep.subr.mxu0 0.0
      %94 = vmatpush1.msra.mxu0 0.0
      %95 = vmatprep.subr.mxu0 0.0
      %96 = vmatpush1.msra.mxu0 0.0
      %97 = vmatprep.subr.mxu0 0.0
      %98 = vmatpush1.msra.mxu0 0.0
      %99 = vmatprep.subr.mxu0 0.0
      %100 = vmatpush1.msra.mxu0 0.0
      %101 = vmatprep.subr.mxu0 0.0
      %102 = vmatpush1.msra.mxu0 0.0
      %103 = vmatprep.subr.mxu0 0.0
      %104 = vmatpush1.msra.mxu0 0.0
      %105 = vmatprep.subr.mxu0 0.0
      %106 = vmatpush1.msra.mxu0 0.0
      %107 = vmatprep.subr.mxu0 0.0
      %108 = vmatpush1.msra.mxu0 0.0
      %109 = vmatprep.subr.mxu0 0.0
      %110 = vmatpush1.msra.mxu0 0.0
      %111 = vmatprep.subr.mxu0 0.0
      %112 = vmatpush1.msra.mxu0 0.0
      %113 = vmatprep.subr.mxu0 0.0
      %114 = vmatpush1.msra.mxu0 0.0
      %115 = vmatprep.subr.mxu0 0.0
      %116 = vmatpush1.msra.mxu0 0.0
      %117 = vmatprep.subr.mxu0 0.0
      %118 = vmatpush1.msra.mxu0 0.0
      %119 = vmatprep.subr.mxu0 0.0
      %120 = vmatpush1.msra.mxu0 0.0
      %121 = vmatprep.subr.mxu0 0.0
      %122 = vmatpush1.msra.mxu0 0.0
      %123 = vmatprep.subr.mxu0 0.0
      %124 = vmatpush1.msra.mxu0 0.0
      %125 = vmatprep.subr.mxu0 0.0
      %126 = vmatpush1.msra.mxu0 0.0
      %127 = vmatprep.subr.mxu0 0.0
      %128 = vmatpush1.msra.mxu0 0.0
      %129 = vmatprep.subr.mxu0 0.0
      %130 = vmatpush1.msra.mxu0 0.0
      %131 = vmatprep.subr.mxu0 0.0
      %132 = vmatpush1.msra.mxu0 0.0
      %133 = vmatprep.subr.mxu0 0.0
      %134 = vmatpush1.msra.mxu0 0.0
      %135 = vmatprep.subr.mxu0 0.0
      %136 = vmatpush1.msra.mxu0 0.0
      %137 = vmatprep.subr.mxu0 0.0
      %138 = vmatpush1.msra.mxu0 0.0
      %139 = vmatprep.subr.mxu0 0.0
      %140 = vmatpush1.msra.mxu0 0.0
      %141 = vmatprep.subr.mxu0 0.0
      %142 = vmatpush1.msra.mxu0 0.0
      %143 = vmatprep.subr.mxu0 0.0
      %144 = vmatpush1.msra.mxu0 0.0
      %145 = vmatprep.subr.mxu0 0.0
      %146 = vmatpush1.msra.mxu0 0.0
      %147 = vmatprep.subr.mxu0 0.0
      %148 = vmatpush1.msra.mxu0 0.0
      %149 = vmatprep.subr.mxu0 0.0
      %150 = vmatpush1.msra.mxu0 0.0
      %151 = vmatprep.subr.mxu0 0.0
      %152 = vmatpush1.msra.mxu0 0.0
      %153 = vmatprep.subr.mxu0 0.0
      %154 = vmatpush1.msra.mxu0 0.0
      %155 = vmatprep.mubr.f32.mxu0 0.0
      %156 = vmatmul.mubr.f32.gmra.mrb[0].mxu0 %v85
      %v157 = vpop.f32.mrb[0].mxu0
      %v158 = vadd.f32 %v60, %v157
      %v159 = vpop.f32.mrb[0].mxu0
      %160 = vdwg.mxu0
      %v161 = vsel %vm79, 1, 0
      %v162 = vlaneseq
      %v163 = vshrl.u32 %v162, 7
      %v164 = vsub.s32 1, %v163
      %v165 = vrot.slane %v161, %v164
      %vm166 = vcmp.eq.s32.totalorder %v165, 1
      %v168 = vsel %vm166, %v158, %v83
      %v169 = vlaneseq
      %v170 = vshrl.u32 %v169, 7
      %v171 = vsub.s32 5, %v170
      %v172 = vrot.slane %v33, %v171
      %vm173 = vcmp.eq.s32.totalorder %v71, %v172
      %v174 = vsel %vm173, 1, 0
      %v175 = vcvt.s32.f32 %v174
      %v177 = vsel %vm84, %v168, 0
      %v180 = vsel %vm87, %v175, 0
      %182 = vmatprep.subr.mxu0 0.0
      %183 = vmatpush1.msra.mxu0 %v180
      %184 = vmatprep.subr.mxu0 0.0
      %185 = vmatpush1.msra.mxu0 0.0
      %186 = vmatprep.subr.mxu0 0.0
      %187 = vmatpush1.msra.mxu0 0.0
      %188 = vmatprep.subr.mxu0 0.0
      %189 = vmatpush1.msra.mxu0 0.0
      %190 = vmatprep.subr.mxu0 0.0
      %191 = vmatpush1.msra.mxu0 0.0
      %192 = vmatprep.subr.mxu0 0.0
      %193 = vmatpush1.msra.mxu0 0.0
      %194 = vmatprep.subr.mxu0 0.0
      %195 = vmatpush1.msra.mxu0 0.0
      %196 = vmatprep.subr.mxu0 0.0
      %197 = vmatpush1.msra.mxu0 0.0
      %198 = vmatprep.subr.mxu0 0.0
      %199 = vmatpush1.msra.mxu0 0.0
      %200 = vmatprep.subr.mxu0 0.0
      %201 = vmatpush1.msra.mxu0 0.0
      %202 = vmatprep.subr.mxu0 0.0
      %203 = vmatpush1.msra.mxu0 0.0
      %204 = vmatprep.subr.mxu0 0.0
      %205 = vmatpush1.msra.mxu0 0.0
      %206 = vmatprep.subr.mxu0 0.0
      %207 = vmatpush1.msra.mxu0 0.0
      %208 = vmatprep.subr.mxu0 0.0
      %209 = vmatpush1.msra.mxu0 0.0
      %210 = vmatprep.subr.mxu0 0.0
      %211 = vmatpush1.msra.mxu0 0.0
      %212 = vmatprep.subr.mxu0 0.0
      %213 = vmatpush1.msra.mxu0 0.0
      %214 = vmatprep.subr.mxu0 0.0
      %215 = vmatpush1.msra.mxu0 0.0
      %216 = vmatprep.subr.mxu0 0.0
      %217 = vmatpush1.msra.mxu0 0.0
      %218 = vmatprep.subr.mxu0 0.0
      %219 = vmatpush1.msra.mxu0 0.0
      %220 = vmatprep.subr.mxu0 0.0
      %221 = vmatpush1.msra.mxu0 0.0
      %222 = vmatprep.subr.mxu0 0.0
      %223 = vmatpush1.msra.mxu0 0.0
      %224 = vmatprep.subr.mxu0 0.0
      %225 = vmatpush1.msra.mxu0 0.0
      %226 = vmatprep.subr.mxu0 0.0
      %227 = vmatpush1.msra.mxu0 0.0
      %228 = vmatprep.subr.mxu0 0.0
      %229 = vmatpush1.msra.mxu0 0.0
      %230 = vmatprep.subr.mxu0 0.0
      %231 = vmatpush1.msra.mxu0 0.0
      %232 = vmatprep.subr.mxu0 0.0
      %233 = vmatpush1.msra.mxu0 0.0
      %234 = vmatprep.subr.mxu0 0.0
      %235 = vmatpush1.msra.mxu0 0.0
      %236 = vmatprep.subr.mxu0 0.0
      %237 = vmatpush1.msra.mxu0 0.0
      %238 = vmatprep.subr.mxu0 0.0
      %239 = vmatpush1.msra.mxu0 0.0
      %240 = vmatprep.subr.mxu0 0.0
      %241 = vmatpush1.msra.mxu0 0.0
      %242 = vmatprep.subr.mxu0 0.0
      %243 = vmatpush1.msra.mxu0 0.0
      %244 = vmatprep.subr.mxu0 0.0
      %245 = vmatpush1.msra.mxu0 0.0
      %246 = vmatprep.mubr.f32.mxu0 0.0
      %247 = vmatmul.mubr.f32.gmra.mrb[0].mxu0 %v177
      %v248 = vpop.f32.mrb[0].mxu0
      %v249 = vadd.f32 %v60, %v248
      %v250 = vpop.f32.mrb[0].mxu0
      %251 = vdwg.mxu0
      %v252 = vlaneseq
      %v253 = vshrl.u32 %v252, 7
      %v254 = vsub.s32 2, %v253
      %v255 = vrot.slane %v161, %v254
      %vm256 = vcmp.eq.s32.totalorder %v255, 1
      %v257 = vsel %vm256, %v249, %v168
      %vm258 = vcmp.eq.s32.totalorder %v18, %v71
      %v259 = vsel %vm258, 1, 0
      %v260 = vcvt.s32.f32 %v259
      %v261 = vrot.slane %v29, 4
      %v262 = vsel %vm84, %v261, 0
      %v265 = vsel %vm87, %v260, 0
      %267 = vmatprep.subr.mxu0 0.0
      %268 = vmatpush1.msra.mxu0 %v265
      %269 = vmatprep.subr.mxu0 0.0
      %270 = vmatpush1.msra.mxu0 0.0
      %271 = vmatprep.subr.mxu0 0.0
      %272 = vmatpush1.msra.mxu0 0.0
      %273 = vmatprep.subr.mxu0 0.0
      %274 = vmatpush1.msra.mxu0 0.0
      %275 = vmatprep.subr.mxu0 0.0
      %276 = vmatpush1.msra.mxu0 0.0
      %277 = vmatprep.subr.mxu0 0.0
      %278 = vmatpush1.msra.mxu0 0.0
      %279 = vmatprep.subr.mxu0 0.0
      %280 = vmatpush1.msra.mxu0 0.0
      %281 = vmatprep.subr.mxu0 0.0
      %282 = vmatpush1.msra.mxu0 0.0
      %283 = vmatprep.subr.mxu0 0.0
      %284 = vmatpush1.msra.mxu0 0.0
      %285 = vmatprep.subr.mxu0 0.0
      %286 = vmatpush1.msra.mxu0 0.0
      %287 = vmatprep.subr.mxu0 0.0
      %288 = vmatpush1.msra.mxu0 0.0
      %289 = vmatprep.subr.mxu0 0.0
      %290 = vmatpush1.msra.mxu0 0.0
      %291 = vmatprep.subr.mxu0 0.0
      %292 = vmatpush1.msra.mxu0 0.0
      %293 = vmatprep.subr.mxu0 0.0
      %294 = vmatpush1.msra.mxu0 0.0
      %295 = vmatprep.subr.mxu0 0.0
      %296 = vmatpush1.msra.mxu0 0.0
      %297 = vmatprep.subr.mxu0 0.0
      %298 = vmatpush1.msra.mxu0 0.0
      %299 = vmatprep.subr.mxu0 0.0
      %300 = vmatpush1.msra.mxu0 0.0
      %301 = vmatprep.subr.mxu0 0.0
      %302 = vmatpush1.msra.mxu0 0.0
      %303 = vmatprep.subr.mxu0 0.0
      %304 = vmatpush1.msra.mxu0 0.0
      %305 = vmatprep.subr.mxu0 0.0
      %306 = vmatpush1.msra.mxu0 0.0
      %307 = vmatprep.subr.mxu0 0.0
      %308 = vmatpush1.msra.mxu0 0.0
      %309 = vmatprep.subr.mxu0 0.0
      %310 = vmatpush1.msra.mxu0 0.0
      %311 = vmatprep.subr.mxu0 0.0
      %312 = vmatpush1.msra.mxu0 0.0
      %313 = vmatprep.subr.mxu0 0.0
      %314 = vmatpush1.msra.mxu0 0.0
      %315 = vmatprep.subr.mxu0 0.0
      %316 = vmatpush1.msra.mxu0 0.0
      %317 = vmatprep.subr.mxu0 0.0
      %318 = vmatpush1.msra.mxu0 0.0
      %319 = vmatprep.subr.mxu0 0.0
      %320 = vmatpush1.msra.mxu0 0.0
      %321 = vmatprep.subr.mxu0 0.0
      %322 = vmatpush1.msra.mxu0 0.0
      %323 = vmatprep.subr.mxu0 0.0
      %324 = vmatpush1.msra.mxu0 0.0
      %325 = vmatprep.subr.mxu0 0.0
      %326 = vmatpush1.msra.mxu0 0.0
      %327 = vmatprep.subr.mxu0 0.0
      %328 = vmatpush1.msra.mxu0 0.0
      %329 = vmatprep.subr.mxu0 0.0
      %330 = vmatpush1.msra.mxu0 0.0
      %331 = vmatprep.mubr.f32.mxu0 0.0
      %332 = vmatmul.mubr.f32.gmra.mrb[0].mxu0 %v262
      %v333 = vpop.f32.mrb[0].mxu0
      %v334 = vadd.f32 0.0, %v333
      %v335 = vpop.f32.mrb[0].mxu0
      %336 = vdwg.mxu0
      %v338 = vsel %vm84, %v257, 0
      %340 = vmatprep.subr.mxu0 0.0
      %341 = vmatpush1.msra.mxu0 %v265
      %342 = vmatprep.subr.mxu0 0.0
      %343 = vmatpush1.msra.mxu0 0.0
      %344 = vmatprep.subr.mxu0 0.0
      %345 = vmatpush1.msra.mxu0 0.0
      %346 = vmatprep.subr.mxu0 0.0
      %347 = vmatpush1.msra.mxu0 0.0
      %348 = vmatprep.subr.mxu0 0.0
      %349 = vmatpush1.msra.mxu0 0.0
      %350 = vmatprep.subr.mxu0 0.0
      %351 = vmatpush1.msra.mxu0 0.0
      %352 = vmatprep.subr.mxu0 0.0
      %353 = vmatpush1.msra.mxu0 0.0
      %354 = vmatprep.subr.mxu0 0.0
      %355 = vmatpush1.msra.mxu0 0.0
      %356 = vmatprep.subr.mxu0 0.0
      %357 = vmatpush1.msra.mxu0 0.0
      %358 = vmatprep.subr.mxu0 0.0
      %359 = vmatpush1.msra.mxu0 0.0
      %360 = vmatprep.subr.mxu0 0.0
      %361 = vmatpush1.msra.mxu0 0.0
      %362 = vmatprep.subr.mxu0 0.0
      %363 = vmatpush1.msra.mxu0 0.0
      %364 = vmatprep.subr.mxu0 0.0
      %365 = vmatpush1.msra.mxu0 0.0
      %366 = vmatprep.subr.mxu0 0.0
      %367 = vmatpush1.msra.mxu0 0.0
      %368 = vmatprep.subr.mxu0 0.0
      %369 = vmatpush1.msra.mxu0 0.0
      %370 = vmatprep.subr.mxu0 0.0
      %371 = vmatpush1.msra.mxu0 0.0
      %372 = vmatprep.subr.mxu0 0.0
      %373 = vmatpush1.msra.mxu0 0.0
      %374 = vmatprep.subr.mxu0 0.0
      %375 = vmatpush1.msra.mxu0 0.0
      %376 = vmatprep.subr.mxu0 0.0
      %377 = vmatpush1.msra.mxu0 0.0
      %378 = vmatprep.subr.mxu0 0.0
      %379 = vmatpush1.msra.mxu0 0.0
      %380 = vmatprep.subr.mxu0 0.0
      %381 = vmatpush1.msra.mxu0 0.0
      %382 = vmatprep.subr.mxu0 0.0
      %383 = vmatpush1.msra.mxu0 0.0
      %384 = vmatprep.subr.mxu0 0.0
      %385 = vmatpush1.msra.mxu0 0.0
      %386 = vmatprep.subr.mxu0 0.0
      %387 = vmatpush1.msra.mxu0 0.0
      %388 = vmatprep.subr.mxu0 0.0
      %389 = vmatpush1.msra.mxu0 0.0
      %390 = vmatprep.subr.mxu0 0.0
      %391 = vmatpush1.msra.mxu0 0.0
      %392 = vmatprep.subr.mxu0 0.0
      %393 = vmatpush1.msra.mxu0 0.0
      %394 = vmatprep.subr.mxu0 0.0
      %395 = vmatpush1.msra.mxu0 0.0
      %396 = vmatprep.subr.mxu0 0.0
      %397 = vmatpush1.msra.mxu0 0.0
      %398 = vmatprep.subr.mxu0 0.0
      %399 = vmatpush1.msra.mxu0 0.0
      %400 = vmatprep.subr.mxu0 0.0
      %401 = vmatpush1.msra.mxu0 0.0
      %402 = vmatprep.subr.mxu0 0.0
      %403 = vmatpush1.msra.mxu0 0.0
      %404 = vmatprep.mubr.f32.mxu0 0.0
      %405 = vmatmul.mubr.f32.gmra.mrb[0].mxu0 %v338
      %v406 = vpop.f32.mrb[0].mxu0
      %v407 = vadd.f32 0.0, %v406
      %v408 = vpop.f32.mrb[0].mxu0
      %409 = vdwg.mxu0
      %v410 = vmin.f32 %v334, 1.0
      %v411 = vlaneseq
      %v412 = vshrl.u32 %v411, 7
      %v413 = vsub.s32 1, %v412
      %v414 = vrot.slane %v334, %v413
      %v415 = vmul.f32 %v407, %v414
      %vm416 = vcmask 1042432
      %v417 = vsel %vm416, %v415, 0.0
      %418 = vadd.xlane.f32.xlu0 %v417
      %v419 = vpop.xlane.xlu0 %418
      %v420 = vrot.slane %v29, 6
      %v421 = vrot.slane %v30, 6
      %v422 = vsel %vm80, %v420, %v421
      %v424 = vsub.f32 %v419, %v422
      %426 = vset.pattern.permute.xlu0 0
      %427 = vperm.xlu0 %426, %v424
      %v428 = vpop.permute.xlu0 %427
      %v430 = vlaneseq
      %v431 = vshrl.u32 %v430, 7
      %v432 = vsub.s32 0, %v431
      %v433 = vrot.slane %v410, %v432
      %v434 = vmul.f32 %v428, %v433
      %v435 = vsub.f32 %v407, %v434
      %v436 = vadd.f32 %v25, %v435
      %v437 = vadd.f32 %v26, %v410
    $region18: #{tpu_custom_call.1} parent=1 // loop_footer
      %s24 = sadd.s32 1, %s20
    $region19: #{tpu_custom_call.1} parent=1 // loop_footer_branch
      %19 = sbr.rel target = $region15
    $region20: #{tpu_custom_call.1} parent=1 // loop_exit
      _
    %438 = vst [vmem:[%s3] sm:$0x7] %v25
    %439 = vst [vmem:[#allocation2] sm:$0x1] %v26
    // Predicated region
    $region21: #{tpu_custom_call.1} parent=1 // pred_check
      _
    $region22: #{tpu_custom_call.1} parent=1 // pred_check_branch
      %441 = sbr.rel (0) target = $region24
    $region23: #{tpu_custom_call.1} parent=1 // pred_region
      _
    $region24: #{tpu_custom_call.1} parent=1 // pred_fallthru
      _
    // Predicated region
    $region25: #{tpu_custom_call.1} parent=1 // pred_check
      _
    $region26: #{tpu_custom_call.1} parent=1 // pred_check_branch
      %443 = sbr.rel (0) target = $region28
    $region27: #{tpu_custom_call.1} parent=1 // pred_region
      %s445 = ssub.s32 16, 16
      %446 = vsyncadd [#allocation3], %s445
      %s448 = sshll.u32 [#allocation2], 4
      %s449 = int_to_ptr.vmem [resolvable:$true] %s448
      %451 = dma.vmem_to_hbm [thread:$0]  %s449, 16, %s4, [#allocation3]
    $region28: #{tpu_custom_call.1} parent=1 // pred_fallthru
      _
    // Predicated region
    $region29: #{tpu_custom_call.1} parent=1 // pred_check
      _
    $region30: #{tpu_custom_call.1} parent=1 // pred_check_branch
      %453 = sbr.rel (0) target = $region32
    $region31: #{tpu_custom_call.1} parent=1 // pred_region
      _
    $region32: #{tpu_custom_call.1} parent=1 // pred_fallthru
      _
    // Predicated region
    $region33: #{tpu_custom_call.1} parent=1 // pred_check
      _
    $region34: #{tpu_custom_call.1} parent=1 // pred_check_branch
      %455 = sbr.rel (0) target = $region36
    $region35: #{tpu_custom_call.1} parent=1 // pred_region
      %456 = dma.done [#allocation3], 16
    $region36: #{tpu_custom_call.1} parent=1 // pred_fallthru
      _
    %457 = vsyncpa [#allocation3], 1

</llo_original>
